<compile_context>
chip_gen: v6e
topology: v6e:2x2x1
jax: 0.10.0
libtpu: 0.0.40
codegen_flags: <defaults>
</compile_context>

<pallas_src>
import functools

import jax
import jax.numpy as jnp
from jax.experimental import pallas as pl
from jax.experimental.pallas import tpu as pltpu

_LANES = 128
_SUBLANES = 8
_MAX_BLOCK_ROWS = 2048         # 2048*128*4B = 1 MiB per f32 input block
_LN2 = 0.6931471805599453      # softplus(0)


def _disc_loss_kernel(*refs, n, pad_total, signs):
    """Streaming sum_i softplus(signs[i] * x_i) over row blocks, finalize to mean."""
    num_in = len(signs)
    x_refs = refs[:num_in]
    out_ref = refs[num_in]
    acc_ref = refs[num_in + 1]

    @pl.when(pl.program_id(0) == 0)
    def _init():
        acc_ref[...] = jnp.zeros_like(acc_ref)

    loss = None
    for x_ref, sign in zip(x_refs, signs):
        z = x_ref[...].astype(jnp.float32)
        if sign < 0:
            z = -z
        # Numerically stable softplus(z); |z| is sign-independent.
        l = jnp.maximum(z, 0.0) + jnp.log1p(jnp.exp(-jnp.abs(z)))
        loss = l if loss is None else loss + l
    acc_ref[...] += loss                      # pure elementwise accumulate per step

    @pl.when(pl.program_id(0) == pl.num_programs(0) - 1)
    def _finalize():
        total = jnp.sum(acc_ref[...])         # single cross-lane reduce
        # Padded zeros contribute exactly softplus(0) = ln 2 each.
        corrected = total - jnp.float32(pad_total) * jnp.float32(_LN2)
        out_ref[0, 0] = corrected / jnp.float32(n)


def _layout(n):
    """Choose (rows_total, block_rows, nblocks, pad_elems) for n flattened elems."""
    rows = pl.cdiv(n, _LANES)
    if rows <= _MAX_BLOCK_ROWS:
        block_rows = max(_SUBLANES, pl.cdiv(rows, _SUBLANES) * _SUBLANES)
        nblocks = 1
    else:
        block_rows = _MAX_BLOCK_ROWS
        nblocks = pl.cdiv(rows, block_rows)
    rows_total = block_rows * nblocks
    pad = rows_total * _LANES - n
    return rows_total, block_rows, nblocks, pad


def _to_slab(x, rows_total):
    """Flatten to (rows_total, 128) in the ORIGINAL dtype. Free when aligned."""
    flat = x.reshape(-1)
    pad = rows_total * _LANES - flat.shape[0]
    if pad:
        # Only for misaligned sizes; padded zeros are corrected in the kernel.
        flat = jnp.pad(flat, (0, pad))
    return flat.reshape(rows_total, _LANES)


def _mean_softplus_sum(inputs, signs):
    """sum_i mean(softplus(signs[i] * inputs[i])); all inputs have the same size."""
    n = int(inputs[0].size)
    rows_total, block_rows, nblocks, pad = _layout(n)
    slabs = [_to_slab(x, rows_total) for x in inputs]

    # n / pad are pure functions of the (static) input shape, so baking them in
    # causes no recompiles beyond shape specialization itself.
    kernel = functools.partial(
        _disc_loss_kernel, n=n, pad_total=pad * len(inputs), signs=tuple(signs))

    out = pl.pallas_call(
        kernel,
        out_shape=jax.ShapeDtypeStruct((1, 1), jnp.float32),
        grid=(nblocks,),
        in_specs=[pl.BlockSpec((block_rows, _LANES), lambda i: (i, 0))
                  for _ in slabs],
        out_specs=pl.BlockSpec(memory_space=pltpu.SMEM),
        scratch_shapes=[pltpu.VMEM((block_rows, _LANES), jnp.float32)],
        compiler_params=pltpu.CompilerParams(
            dimension_semantics=("arbitrary",),
            vmem_limit_bytes=32 * 1024 * 1024),
    )(*slabs)
    return out[0, 0]


def discriminator_loss(disc_label_result, disc_generator_result):
    if disc_label_result.shape == disc_generator_result.shape:
        # Fused single streaming pass over both logit maps (typical case).
        return _mean_softplus_sum(
            [disc_label_result, disc_generator_result], signs=(-1, +1))
    # Shapes differ: two independent streaming reductions.
    real = _mean_softplus_sum([disc_label_result], signs=(-1,))
    gen = _mean_softplus_sum([disc_generator_result], signs=(+1,))
    return real + gen


def _ref_loss(lab, gen):
    """Pure-JAX reference (stable softplus form of BCEWithLogits)."""
    sp = lambda x: jnp.maximum(x, 0.0) + jnp.log1p(jnp.exp(-jnp.abs(x)))
    return jnp.mean(sp(gen)) + jnp.mean(sp(-lab))


if __name__ == "__main__":
    key = jax.random.PRNGKey(0)
    k1, k2, k3, k4 = jax.random.split(key, 4)

    # PatchGAN-style discriminator logit maps, NCHW (small synthetic shapes).
    disc_label_result = jax.random.normal(k1, (2, 1, 16, 16), jnp.float32)
    disc_generator_result = jax.random.normal(k2, (2, 1, 16, 16), jnp.float32)

    loss = discriminator_loss(disc_label_result, disc_generator_result)
    loss = jax.block_until_ready(loss)
    expected = _ref_loss(disc_label_result, disc_generator_result)
    assert jnp.allclose(loss, expected, rtol=1e-5, atol=1e-5), (loss, expected)

    # Misaligned element count exercises the pad + ln2-correction path.
    lab_odd = jax.random.normal(k3, (2, 1, 15, 15), jnp.float32)
    gen_odd = jax.random.normal(k4, (2, 1, 15, 15), jnp.float32)
    loss_odd = jax.block_until_ready(discriminator_loss(lab_odd, gen_odd))
    expected_odd = _ref_loss(lab_odd, gen_odd)
    assert jnp.allclose(loss_odd, expected_odd, rtol=1e-5, atol=1e-5), (
        loss_odd, expected_odd)

    print("KERNEL_OK")
</pallas_src>

<mosaic_0001>
module attributes {stable_mosaic.version = 11 : i64} {
  func.func @_disc_loss_kernel(%arg0: i32, %arg1: memref<8x128xf32, #tpu.memory_space<vmem>>, %arg2: memref<8x128xf32, #tpu.memory_space<vmem>>, %arg3: memref<1x1xf32, #tpu.memory_space<smem>>, %arg4: memref<8x128xf32, #tpu.memory_space<vmem>>) attributes {dimension_semantics = [#tpu.dimension_semantics<arbitrary>], iteration_bounds = array<i64: 1>, scalar_prefetch = 0 : i64, scratch_operands = 1 : i64, tpu.core_type = #tpu.core_type<tc>, window_params = [{transform_indices = @transform_0, window_bounds = array<i64: 8, 128>}, {transform_indices = @transform_1, window_bounds = array<i64: 8, 128>}, {transform_indices = @transform_2, window_bounds = array<i64: 1, 1>}]} {
    %c0_i32 = arith.constant 0 : i32
    %0 = arith.cmpi eq, %arg0, %c0_i32 : i32
    %1 = arith.extui %0 : i1 to i32
    %c0_i32_0 = arith.constant 0 : i32
    %2 = arith.cmpi ne, %1, %c0_i32_0 : i32
    scf.if %2 {
      %cst_14 = arith.constant 0.000000e+00 : f32
      %30 = vector.broadcast %cst_14 : f32 to vector<8x128xf32>
      %c0_15 = arith.constant 0 : index
      %c0_16 = arith.constant 0 : index
      %31 = vector.load %arg4[%c0_15, %c0_16] : memref<8x128xf32, #tpu.memory_space<vmem>>, vector<8x128xf32>
      tpu.vector_store %arg4[%c0_15, %c0_16], %30 {strides = array<i32>} : memref<8x128xf32, #tpu.memory_space<vmem>>, vector<8x128xf32>,
    } else {
    }
    %c0 = arith.constant 0 : index
    %c0_1 = arith.constant 0 : index
    %3 = vector.load %arg1[%c0, %c0_1] : memref<8x128xf32, #tpu.memory_space<vmem>>, vector<8x128xf32>
    %cst = arith.constant 0.000000e+00 : f32
    %4 = vector.broadcast %cst : f32 to vector<8x128xf32>
    %5 = arith.subf %4, %3 : vector<8x128xf32>
    %cst_2 = arith.constant 0.000000e+00 : f32
    %6 = vector.broadcast %cst_2 : f32 to vector<8x128xf32>
    %7 = arith.maximumf %5, %6 : vector<8x128xf32>
    %8 = math.absf %5 : vector<8x128xf32>
    %cst_3 = arith.constant 0.000000e+00 : f32
    %9 = vector.broadcast %cst_3 : f32 to vector<8x128xf32>
    %10 = arith.subf %9, %8 : vector<8x128xf32>
    %11 = math.exp %10 : vector<8x128xf32>
    %12 = math.log1p %11 : vector<8x128xf32>
    %13 = arith.addf %7, %12 : vector<8x128xf32>
    %c0_4 = arith.constant 0 : index
    %c0_5 = arith.constant 0 : index
    %14 = vector.load %arg2[%c0_4, %c0_5] : memref<8x128xf32, #tpu.memory_space<vmem>>, vector<8x128xf32>
    %cst_6 = arith.constant 0.000000e+00 : f32
    %15 = vector.broadcast %cst_6 : f32 to vector<8x128xf32>
    %16 = arith.maximumf %14, %15 : vector<8x128xf32>
    %17 = math.absf %14 : vector<8x128xf32>
    %cst_7 = arith.constant 0.000000e+00 : f32
    %18 = vector.broadcast %cst_7 : f32 to vector<8x128xf32>
    %19 = arith.subf %18, %17 : vector<8x128xf32>
    %20 = math.exp %19 : vector<8x128xf32>
    %21 = math.log1p %20 : vector<8x128xf32>
    %22 = arith.addf %16, %21 : vector<8x128xf32>
    %23 = arith.addf %13, %22 : vector<8x128xf32>
    %c0_8 = arith.constant 0 : index
    %c0_9 = arith.constant 0 : index
    %24 = vector.load %arg4[%c0_8, %c0_9] : memref<8x128xf32, #tpu.memory_space<vmem>>, vector<8x128xf32>
    %25 = arith.addf %24, %23 : vector<8x128xf32>
    %c0_10 = arith.constant 0 : index
    %c0_11 = arith.constant 0 : index
    %26 = vector.load %arg4[%c0_10, %c0_11] : memref<8x128xf32, #tpu.memory_space<vmem>>, vector<8x128xf32>
    tpu.vector_store %arg4[%c0_10, %c0_11], %25 {strides = array<i32>} : memref<8x128xf32, #tpu.memory_space<vmem>>, vector<8x128xf32>,
    %c0_i32_12 = arith.constant 0 : i32
    %27 = arith.cmpi eq, %arg0, %c0_i32_12 : i32
    %28 = arith.extui %27 : i1 to i32
    %c0_i32_13 = arith.constant 0 : i32
    %29 = arith.cmpi ne, %28, %c0_i32_13 : i32
    scf.if %29 {
      %c0_14 = arith.constant 0 : index
      %c0_15 = arith.constant 0 : index
      %30 = vector.load %arg4[%c0_14, %c0_15] : memref<8x128xf32, #tpu.memory_space<vmem>>, vector<8x128xf32>
      %31 = vector.shape_cast %30 : vector<8x128xf32> to vector<1x8x128xf32>
      %cst_16 = arith.constant dense<0.000000e+00> : vector<1xf32>
      %32 = vector.multi_reduction <add>, %31, %cst_16 [1, 2] : vector<1x8x128xf32> to vector<1xf32>
      %33 = vector.shape_cast %32 : vector<1xf32> to vector<1x1x1xf32>
      %34 = vector.extract %33[0, 0, 0] : f32 from vector<1x1x1xf32>
      %cst_17 = arith.constant 1.024000e+03 : f32
      %cst_18 = arith.constant 0.693147182 : f32
      %35 = arith.mulf %cst_17, %cst_18 : f32
      %36 = arith.subf %34, %35 : f32
      %cst_19 = arith.constant 5.120000e+02 : f32
      %37 = arith.divf %36, %cst_19 : f32
      %c0_20 = arith.constant 0 : index
      %c0_21 = arith.constant 0 : index
      %38 = memref.load %arg3[%c0_20, %c0_21] : memref<1x1xf32, #tpu.memory_space<smem>>
      memref.store %37, %arg3[%c0_20, %c0_21] : memref<1x1xf32, #tpu.memory_space<smem>>
    } else {
    }
    return
  }
  func.func @transform_0(%arg0: i32) -> (i32, i32) {
    %c0_i32 = arith.constant 0 : i32
    %c0_i32_0 = arith.constant 0 : i32
    return %arg0, %c0_i32 : i32, i32
  }
  func.func @transform_1(%arg0: i32) -> (i32, i32) {
    %c0_i32 = arith.constant 0 : i32
    %c0_i32_0 = arith.constant 0 : i32
    return %arg0, %c0_i32 : i32, i32
  }
  func.func @transform_2(%arg0: i32) -> (i32, i32) {
    %c0_i32 = arith.constant 0 : i32
    %c0_i32_0 = arith.constant 0 : i32
    %c0_i32_1 = arith.constant 0 : i32
    return %c0_i32, %c0_i32_0 : i32, i32
  }
}

</mosaic_0001>

<llo_original>
// kernel: tpu_custom_call.1
$region0: #{tpu_custom_call.1}
  #allocation0 [shape = 'u32[]', space=smem, size = 0x4, offset = 0x4, fixed_abs, tag = 'smem constant byte address 0x4 - core index']
  #allocation1 [shape = 'u32[144,128]{1,0:T(1,128)}', space=vmem, size = 0x12000, scoped, tag = 'internal scratch']
  #allocation2 [shape = 'f32[8,128]{1,0:T(8,128)}', space=vmem, size = 0x1000, scoped, tag = 'scratch operand']
  %s0 = inlined_call_operand.hbm [shape: f32[8,128], index: 0, kind: input, shape index: {}]
  %s1 = inlined_call_operand.hbm [shape: f32[8,128], index: 1, kind: input, shape index: {}]
  %s2 = inlined_call_operand.hbm [shape: f32[1,1], index: 2, kind: output, shape index: {}]
  %s3 = sld [smem:[#allocation0]]
  $region34: #{tpu_custom_call.1} parent=0
    _
  %s5 = ssub.s32 1, %s3
  %s6 = scalar_select 0, %s5, %s3
  $region1: #{tpu_custom_call.1} parent=0
    #allocation3 [shape = 'u8[4096]{0}', space=vmem, size = 0x1000, scoped, tag = 'input window, operand 0, single buffered']
    #allocation4 [shape = 's32[1]{0}', space=sflag, size = 0x4, scoped, tag = 'scoped memory for tpu_custom_call.1']
    #allocation5 [shape = 's32[1]{0}', space=sflag, size = 0x4, scoped, tag = 'scoped memory for tpu_custom_call.1']
    #allocation6 [shape = 'u8[4096]{0}', space=vmem, size = 0x1000, scoped, tag = 'input window, operand 1, single buffered']
    #allocation7 [shape = 's32[1]{0}', space=sflag, size = 0x4, scoped, tag = 'scoped memory for tpu_custom_call.1']
    #allocation8 [shape = 'u8[512]{0}', space=smem, size = 0x200, scoped, tag = 'output window, operand 0, single buffered']
    %7 = vsyncpa [#allocation4], 0
    %8 = vsyncpa [#allocation7], 0
    %9 = vsyncpa [#allocation5], 0
    // Predicated region
    $region2: #{tpu_custom_call.1} parent=1 // pred_check
      _
    $region3: #{tpu_custom_call.1} parent=1 // pred_check_branch
      %11 = sbr.rel (0) target = $region5
    $region4: #{tpu_custom_call.1} parent=1 // pred_region
      %s13 = ssub.s32 128, 128
      %14 = vsyncadd [#allocation4], %s13
      %s16 = sshll.u32 [#allocation3], 4
      %s17 = int_to_ptr.vmem [resolvable:$true] %s16
      %19 = dma.hbm_to_vmem [thread:$0]  %s0, 128, %s17, [#allocation4]
    $region5: #{tpu_custom_call.1} parent=1 // pred_fallthru
      _
    // Predicated region
    $region6: #{tpu_custom_call.1} parent=1 // pred_check
      _
    $region7: #{tpu_custom_call.1} parent=1 // pred_check_branch
      %21 = sbr.rel (0) target = $region9
    $region8: #{tpu_custom_call.1} parent=1 // pred_region
      %s23 = ssub.s32 128, 128
      %24 = vsyncadd [#allocation7], %s23
      %s26 = sshll.u32 [#allocation6], 4
      %s27 = int_to_ptr.vmem [resolvable:$true] %s26
      %29 = dma.hbm_to_vmem [thread:$0]  %s1, 128, %s27, [#allocation7]
    $region9: #{tpu_custom_call.1} parent=1 // pred_fallthru
      _
    // Predicated region
    $region10: #{tpu_custom_call.1} parent=1 // pred_check
      _
    $region11: #{tpu_custom_call.1} parent=1 // pred_check_branch
      %31 = sbr.rel (0) target = $region13
    $region12: #{tpu_custom_call.1} parent=1 // pred_region
      %32 = dma.done [#allocation4], 128
    $region13: #{tpu_custom_call.1} parent=1 // pred_fallthru
      _
    // Predicated region
    $region14: #{tpu_custom_call.1} parent=1 // pred_check
      _
    $region15: #{tpu_custom_call.1} parent=1 // pred_check_branch
      %34 = sbr.rel (0) target = $region17
    $region16: #{tpu_custom_call.1} parent=1 // pred_region
      %35 = dma.done [#allocation7], 128
    $region17: #{tpu_custom_call.1} parent=1 // pred_fallthru
      _
    %p36 = scmp.eq.s32.totalorder 0, 0
    // Predicated region
    $region18: #{tpu_custom_call.1} parent=1 // pred_check
      %p37 = pneg %p36
    $region19: #{tpu_custom_call.1} parent=1 // pred_check_branch
      %39 = sbr.rel (%p37) target = $region21
    $region20: #{tpu_custom_call.1} parent=1 // pred_region
      %40 = vst [vmem:[#allocation2] sm:$0xff] 0.0
    $region21: #{tpu_custom_call.1} parent=1 // pred_fallthru
      _
    %v41 = vld [vmem:[#allocation3] sm:$0xff]
    %v42 = vsub.f32 0.0, %v41
    %v43 = vmax.f32 %v42, 0.0
    %v44 = vand.u32 2147483647, %v42
    %v45 = vsub.f32 0.0, %v44
    %v46 = vmul.f32 %v45, 1.442695
    %v47 = vpow.pop %v46
    %v48 = vadd.f32 %v47, 1.0
    %v49 = vlog2.pop %v48
    %v50 = vmul.f32 %v49, 0.6931472
    %v51 = vmul.f32 -0.5, %v47
    %v52 = vadd.f32 %v51, 1.0
    %v53 = vmul.f32 %v52, %v47
    %v54 = vand.u32 2147483647, %v47
    %vm55 = vcmp.lt.f32.partialorder %v54, 0.0004427343
    %v56 = vsel %vm55, %v53, %v50
    %v57 = vadd.f32 %v43, %v56
    %v58 = vld [vmem:[#allocation6] sm:$0xff]
    %v59 = vmax.f32 %v58, 0.0
    %v60 = vand.u32 2147483647, %v58
    %v61 = vsub.f32 0.0, %v60
    %v62 = vmul.f32 %v61, 1.442695
    %v63 = vpow.pop %v62
    %v64 = vadd.f32 %v63, 1.0
    %v65 = vlog2.pop %v64
    %v66 = vmul.f32 %v65, 0.6931472
    %v67 = vmul.f32 -0.5, %v63
    %v68 = vadd.f32 %v67, 1.0
    %v69 = vmul.f32 %v68, %v63
    %v70 = vand.u32 2147483647, %v63
    %vm71 = vcmp.lt.f32.partialorder %v70, 0.0004427343
    %v72 = vsel %vm71, %v69, %v66
    %v73 = vadd.f32 %v59, %v72
    %v74 = vadd.f32 %v57, %v73
    %v75 = vld [vmem:[#allocation2] sm:$0xff]
    %v76 = vadd.f32 %v75, %v74
    %77 = vst [vmem:[#allocation2] sm:$0xff] %v76
    // Predicated region
    $region22: #{tpu_custom_call.1} parent=1 // pred_check
      %p78 = pneg %p36
    $region23: #{tpu_custom_call.1} parent=1 // pred_check_branch
      %80 = sbr.rel (%p78) target = $region25
    $region24: #{tpu_custom_call.1} parent=1 // pred_region
      %v81 = vld [vmem:[#allocation2] sm:$0xff]
      %82 = vadd.xlane.f32.xlu0 %v81
      %v83 = vpop.xlane.xlu0 %82
      %v84 = vrot.slane %v83, 4
      %v85 = vadd.f32 %v83, %v84
      %v86 = vrot.slane %v85, 2
      %v87 = vadd.f32 %v85, %v86
      %v88 = vrot.slane %v87, 1
      %v89 = vadd.f32 %v87, %v88
      %s90 = vtos %v89
      %s91 = ssub.f32 %s90, 709.7827
      %v92 = vrcp.pop 512.0
      %s93 = vtos %v92
      %s94 = smul.f32 %s91, %s93
      %s95 = scalar_lea.smem [#allocation8], 0
      %96 = sst [smem:[%s95]] %s94
    $region25: #{tpu_custom_call.1} parent=1 // pred_fallthru
      _
    // Predicated region
    $region26: #{tpu_custom_call.1} parent=1 // pred_check
      _
    $region27: #{tpu_custom_call.1} parent=1 // pred_check_branch
      %98 = sbr.rel (0) target = $region29
    $region28: #{tpu_custom_call.1} parent=1 // pred_region
      %s100 = ssub.s32 16, 16
      %101 = vsyncadd [#allocation5], %s100
      %104 = dma.smem_to_hbm [#allocation8], 16, %s2, [#allocation5]
    $region29: #{tpu_custom_call.1} parent=1 // pred_fallthru
      _
    // Predicated region
    $region30: #{tpu_custom_call.1} parent=1 // pred_check
      _
    $region31: #{tpu_custom_call.1} parent=1 // pred_check_branch
      %106 = sbr.rel (0) target = $region33
    $region32: #{tpu_custom_call.1} parent=1 // pred_region
      %107 = dma.done [#allocation5], 16
    $region33: #{tpu_custom_call.1} parent=1 // pred_fallthru
      _
    %108 = sfence
    %109 = vsyncpa [#allocation4], 1
    %110 = vsyncpa [#allocation7], 1
    %111 = vsyncpa [#allocation5], 1

</llo_original>
